<compile_context>
chip_gen: v7x
topology: tpu7x:2x2x1
jax: 0.10.0
libtpu: 0.0.40
codegen_flags: <defaults>
</compile_context>

<pallas_src>
import jax
import jax.numpy as jnp
from jax.experimental import pallas as pl
from jax.experimental.pallas import tpu as pltpu

C_IN = 400        # i3d feature channels (fc_model input)
N_CLASSES = 101
K_PAD = 128       # lane-dense padded output width (101 -> 128)
LANE = 128
_SUBLANE = {4: 8, 2: 16, 1: 32}   # itemsize -> sublane tile


def _head_kernel(x_ref, w_ref, b_ref, o_ref):
    """Fused temporal-pool + ReLU + Linear head on one batch tile.

    x_ref: (TB, T, C)   time-major features; C on the lane axis.
    w_ref: (C, K_PAD)   fc weight^T, pre-scaled by 1/T, zero-padded 101 -> 128.
    b_ref: (1, K_PAD)   fc bias, zero-padded.
    o_ref: (TB, K_PAD)  padded logits.
    """
    T = x_ref.shape[1]
    # AvgPool1d(kernel_size=T) + squeeze:
    #   ReLU(mean_t(x)) @ W == ReLU(sum_t(x)) @ (W / T)   (since 1/T > 0),
    # so only the temporal SUM is computed here; the 1/T is folded into w_ref.
    if T <= 32:
        # Streaming f32 accumulation, one (TB, C) time-slice at a time — never
        # materialises an f32 copy of the whole (possibly bf16) block.
        pooled = x_ref[:, 0, :].astype(jnp.float32)
        for t in range(1, T):
            pooled = pooled + x_ref[:, t, :].astype(jnp.float32)
    else:
        pooled = jnp.sum(x_ref[...], axis=1, dtype=jnp.float32)      # (TB, C)

    act = jnp.maximum(pooled, 0.0)                                    # ReLU

    # TODO(synk): nn.Dropout(p=0.5) is identity at inference; training-mode
    # random masking (pltpu.prng_*) with 1/(1-p) scaling intentionally omitted.

    # Linear(400 -> 101) on the MXU.  f32 operands kept deliberately: this
    # matmul is a negligible fraction of the (HBM-bound) work and f32 keeps
    # the logits bit-tight; the v5e bf16-operand variant buys nothing here.
    logits = jnp.dot(act, w_ref[...], preferred_element_type=jnp.float32)
    o_ref[...] = logits + b_ref[...]


def _round_up(n, m):
    return -(-n // m) * m


def _vmem_budget_bytes():
    """Physical VMEM minus headroom; falls back to the smallest (v7x) size."""
    try:
        cap = int(pltpu.get_tpu_info().vmem_capacity_bytes)
    except Exception:
        cap = 64 * 1024 * 1024
    return max(16 * 1024 * 1024, (cap * 3) // 4)


def _choose_batch_tile(B, T, itemsize, vmem_limit):
    """Largest batch tile whose PADDED VMEM footprint fits the VMEM budget.

    Accounts for lane padding (C: 400 -> 512) and sublane padding of T, the
    2x double-buffering of the input and output blocks, and the resident
    (double-buffered) weight/bias buffers.
    """
    sub = _SUBLANE[itemsize]
    lane_pad = _round_up(C_IN, LANE)                                   # 512
    row_bytes = _round_up(max(T, 1), sub) * lane_pad * itemsize        # per batch row, padded
    fixed = 2 * (C_IN * K_PAD * 4) + 2 * (8 * K_PAD * 4)               # weight + bias buffers
    per_row = 2 * row_bytes + 2 * K_PAD * 4                            # input + output, x2 buffers
    usable = int(vmem_limit * 0.85) - fixed                            # headroom for compiler scratch

    tb = max(8, usable // per_row)
    tb = min(tb, (16 * 1024 * 1024) // row_bytes)   # keep a single input buffer <= 16 MiB
    b8 = _round_up(B, 8)
    if b8 >= 16:
        tb = min(tb, b8 // 2)                       # >= 2 grid steps -> both v7x TCs get work
    tb = max(8, (tb // 8) * 8)
    return int(min(tb, b8))


def i3d_rgb_ucf101_head(x_vid_feats, fc_weight, fc_bias, *, channels_last=False):
    """Head of I3dRgbUcf101 (eval mode).

    x_vid_feats: (B, 400, T) native i3d output (NCW), or (B, T, 400) if
                 channels_last=True.  float32 or bfloat16.
    fc_weight:   (101, 400)  PyTorch nn.Linear weight layout.
    fc_bias:     (101,).
    returns:     (B, 101) float32 logits.
    """
    if channels_last:
        B, T, C = x_vid_feats.shape
        x_btc = x_vid_feats
    else:
        B, C, T = x_vid_feats.shape
        # One XLA transpose so C sits on the lane axis inside the kernel.
        x_btc = jnp.transpose(x_vid_feats, (0, 2, 1))
    assert C == C_IN, f"fc_model expects {C_IN} channels, got {C}"
    K = N_CLASSES

    itemsize = x_btc.dtype.itemsize
    vmem_limit = _vmem_budget_bytes()
    TB = _choose_batch_tile(B, T, itemsize, vmem_limit)
    B_pad = _round_up(B, TB)
    if B_pad != B:
        # Zero tail rows: sum=0 -> relu=0 -> bias-only logits, sliced off below.
        x_btc = jnp.pad(x_btc, ((0, B_pad - B), (0, 0), (0, 0)))

    # One-time parameter prep: transpose, fold the 1/T pooling scale into the
    # weight, zero-pad the class dim to a lane-dense 128.
    w_ck = jnp.pad(jnp.transpose(fc_weight, (1, 0)).astype(jnp.float32) / T,
                   ((0, 0), (0, K_PAD - K)))
    b_1k = jnp.pad(fc_bias.astype(jnp.float32), (0, K_PAD - K)).reshape(1, K_PAD)

    cost = pl.CostEstimate(
        flops=B_pad * C * T                 # temporal sum
              + B_pad * C                   # ReLU
              + 2 * B_pad * C * K_PAD,      # fc matmul
        transcendentals=0,
        bytes_accessed=(B_pad * T * C * itemsize
                        + C * K_PAD * 4 + K_PAD * 4
                        + B_pad * K_PAD * 4),
    )

    out = pl.pallas_call(
        _head_kernel,
        out_shape=jax.ShapeDtypeStruct((B_pad, K_PAD), jnp.float32),
        grid=(B_pad // TB,),
        in_specs=[
            pl.BlockSpec((TB, T, C), lambda i: (i, 0, 0)),
            pl.BlockSpec((C, K_PAD), lambda i: (0, 0)),
            pl.BlockSpec((1, K_PAD), lambda i: (0, 0)),
        ],
        out_specs=pl.BlockSpec((TB, K_PAD), lambda i: (i, 0)),
        compiler_params=pltpu.CompilerParams(
            dimension_semantics=("parallel",),
            vmem_limit_bytes=vmem_limit),
        cost_estimate=cost,
    )(x_btc, w_ck, b_1k)

    return out[:B, :K]


def _reference(x_vid_feats, fc_weight, fc_bias):
    # Pure-JAX reference mirroring the PyTorch forward (eval mode).
    pooled = jnp.mean(x_vid_feats.astype(jnp.float32), axis=2)  # AvgPool1d + squeeze
    act = jnp.maximum(pooled, 0.0)                              # ReLU (dropout = id)
    return act @ fc_weight.T + fc_bias                          # Linear(400, 101)


if __name__ == "__main__":
    key = jax.random.PRNGKey(0)
    k_x, k_w, k_b = jax.random.split(key, 3)

    B, T = 2, 8                                                 # small test shapes
    # i3d backbone output features (B, 400, T), native NCW layout.
    x_vid_feats = jax.random.normal(k_x, (B, C_IN, T), dtype=jnp.float32)

    # Deterministic nn.Linear(400, 101) parameters (kaiming-uniform-like).
    bound = 1.0 / (C_IN ** 0.5)
    fc_weight = jax.random.uniform(
        k_w, (N_CLASSES, C_IN), dtype=jnp.float32, minval=-bound, maxval=bound)
    fc_bias = jax.random.uniform(
        k_b, (N_CLASSES,), dtype=jnp.float32, minval=-bound, maxval=bound)

    # f32 path (matches the PyTorch module's dtype).
    logits = jax.block_until_ready(
        i3d_rgb_ucf101_head(x_vid_feats, fc_weight, fc_bias))
    ref = _reference(x_vid_feats, fc_weight, fc_bias)
    assert logits.shape == (B, N_CLASSES), logits.shape
    assert jnp.allclose(logits, ref, atol=1e-4, rtol=1e-4), \
        float(jnp.max(jnp.abs(logits - ref)))

    # bf16 feature path (halves HBM traffic for this mem-bound head).
    x_bf16 = x_vid_feats.astype(jnp.bfloat16)
    logits_bf = jax.block_until_ready(
        i3d_rgb_ucf101_head(x_bf16, fc_weight, fc_bias))
    ref_bf = _reference(x_bf16, fc_weight, fc_bias)
    assert jnp.allclose(logits_bf, ref_bf, atol=5e-3, rtol=5e-3), \
        float(jnp.max(jnp.abs(logits_bf - ref_bf)))

    # Time-major (channels_last) path: skips the wrapper transpose entirely.
    x_btc = jnp.transpose(x_vid_feats, (0, 2, 1))
    logits_cl = jax.block_until_ready(
        i3d_rgb_ucf101_head(x_btc, fc_weight, fc_bias, channels_last=True))
    assert jnp.allclose(logits_cl, ref, atol=1e-4, rtol=1e-4), \
        float(jnp.max(jnp.abs(logits_cl - ref)))

    # Larger batch: exercises multi-step parallel grid (>=2 tiles -> both v7x TCs).
    B2, T2 = 64, 8
    x2 = jax.random.normal(k_x, (B2, C_IN, T2), dtype=jnp.float32)
    logits2 = jax.block_until_ready(i3d_rgb_ucf101_head(x2, fc_weight, fc_bias))
    ref2 = _reference(x2, fc_weight, fc_bias)
    assert jnp.allclose(logits2, ref2, atol=1e-4, rtol=1e-4), \
        float(jnp.max(jnp.abs(logits2 - ref2)))

    print("KERNEL_OK")
</pallas_src>

<mosaic_0001>
module attributes {stable_mosaic.version = 11 : i64} {
  func.func @_head_kernel(%arg0: i32, %arg1: memref<8x8x400xf32, #tpu.memory_space<vmem>>, %arg2: memref<400x128xf32, #tpu.memory_space<vmem>>, %arg3: memref<1x128xf32, #tpu.memory_space<vmem>>, %arg4: memref<8x128xf32, #tpu.memory_space<vmem>>) attributes {dimension_semantics = [#tpu.dimension_semantics<parallel>], iteration_bounds = array<i64: 1>, scalar_prefetch = 0 : i64, scratch_operands = 0 : i64, tpu.core_type = #tpu.core_type<tc>, window_params = [{transform_indices = @transform_0, window_bounds = array<i64: 8, 8, 400>}, {pipeline_mode = #tpu.pipeline_mode<synchronous>, transform_indices = @transform_1, window_bounds = array<i64: 400, 128>}, {pipeline_mode = #tpu.pipeline_mode<synchronous>, transform_indices = @transform_2, window_bounds = array<i64: 1, 128>}, {transform_indices = @transform_3, window_bounds = array<i64: 8, 128>}]} {
    %c0 = arith.constant 0 : index
    %c0_0 = arith.constant 0 : index
    %c0_1 = arith.constant 0 : index
    %0 = vector.load %arg1[%c0, %c0_0, %c0_1] : memref<8x8x400xf32, #tpu.memory_space<vmem>>, vector<8x1x400xf32>
    %1 = vector.shape_cast %0 : vector<8x1x400xf32> to vector<8x400xf32>
    %c0_2 = arith.constant 0 : index
    %c1 = arith.constant 1 : index
    %c0_3 = arith.constant 0 : index
    %2 = vector.load %arg1[%c0_2, %c1, %c0_3] : memref<8x8x400xf32, #tpu.memory_space<vmem>>, vector<8x1x400xf32>
    %3 = vector.shape_cast %2 : vector<8x1x400xf32> to vector<8x400xf32>
    %4 = arith.addf %1, %3 : vector<8x400xf32>
    %c0_4 = arith.constant 0 : index
    %c2 = arith.constant 2 : index
    %c0_5 = arith.constant 0 : index
    %5 = vector.load %arg1[%c0_4, %c2, %c0_5] : memref<8x8x400xf32, #tpu.memory_space<vmem>>, vector<8x1x400xf32>
    %6 = vector.shape_cast %5 : vector<8x1x400xf32> to vector<8x400xf32>
    %7 = arith.addf %4, %6 : vector<8x400xf32>
    %c0_6 = arith.constant 0 : index
    %c3 = arith.constant 3 : index
    %c0_7 = arith.constant 0 : index
    %8 = vector.load %arg1[%c0_6, %c3, %c0_7] : memref<8x8x400xf32, #tpu.memory_space<vmem>>, vector<8x1x400xf32>
    %9 = vector.shape_cast %8 : vector<8x1x400xf32> to vector<8x400xf32>
    %10 = arith.addf %7, %9 : vector<8x400xf32>
    %c0_8 = arith.constant 0 : index
    %c4 = arith.constant 4 : index
    %c0_9 = arith.constant 0 : index
    %11 = vector.load %arg1[%c0_8, %c4, %c0_9] : memref<8x8x400xf32, #tpu.memory_space<vmem>>, vector<8x1x400xf32>
    %12 = vector.shape_cast %11 : vector<8x1x400xf32> to vector<8x400xf32>
    %13 = arith.addf %10, %12 : vector<8x400xf32>
    %c0_10 = arith.constant 0 : index
    %c5 = arith.constant 5 : index
    %c0_11 = arith.constant 0 : index
    %14 = vector.load %arg1[%c0_10, %c5, %c0_11] : memref<8x8x400xf32, #tpu.memory_space<vmem>>, vector<8x1x400xf32>
    %15 = vector.shape_cast %14 : vector<8x1x400xf32> to vector<8x400xf32>
    %16 = arith.addf %13, %15 : vector<8x400xf32>
    %c0_12 = arith.constant 0 : index
    %c6 = arith.constant 6 : index
    %c0_13 = arith.constant 0 : index
    %17 = vector.load %arg1[%c0_12, %c6, %c0_13] : memref<8x8x400xf32, #tpu.memory_space<vmem>>, vector<8x1x400xf32>
    %18 = vector.shape_cast %17 : vector<8x1x400xf32> to vector<8x400xf32>
    %19 = arith.addf %16, %18 : vector<8x400xf32>
    %c0_14 = arith.constant 0 : index
    %c7 = arith.constant 7 : index
    %c0_15 = arith.constant 0 : index
    %20 = vector.load %arg1[%c0_14, %c7, %c0_15] : memref<8x8x400xf32, #tpu.memory_space<vmem>>, vector<8x1x400xf32>
    %21 = vector.shape_cast %20 : vector<8x1x400xf32> to vector<8x400xf32>
    %22 = arith.addf %19, %21 : vector<8x400xf32>
    %cst = arith.constant 0.000000e+00 : f32
    %23 = vector.broadcast %cst : f32 to vector<8x400xf32>
    %24 = arith.maximumf %22, %23 : vector<8x400xf32>
    %c0_16 = arith.constant 0 : index
    %c0_17 = arith.constant 0 : index
    %25 = vector.load %arg2[%c0_16, %c0_17] : memref<400x128xf32, #tpu.memory_space<vmem>>, vector<400x128xf32>
    %cst_18 = arith.constant dense<0.000000e+00> : vector<8x128xf32>
    %26 = tpu.matmul %24, %25, %cst_18 {dimension_numbers = #tpu.dot_dimension_numbers<[1], [0], [0], [1], [0, 0, 1, 1], [], []>} : vector<8x400xf32>, vector<400x128xf32>, vector<8x128xf32> -> vector<8x128xf32>
    %c0_19 = arith.constant 0 : index
    %c0_20 = arith.constant 0 : index
    %27 = vector.load %arg3[%c0_19, %c0_20] : memref<1x128xf32, #tpu.memory_space<vmem>>, vector<1x128xf32>
    %28 = vector.broadcast %27 : vector<1x128xf32> to vector<8x128xf32>
    %29 = arith.addf %26, %28 : vector<8x128xf32>
    %c0_21 = arith.constant 0 : index
    %c0_22 = arith.constant 0 : index
    %30 = vector.load %arg4[%c0_21, %c0_22] : memref<8x128xf32, #tpu.memory_space<vmem>>, vector<8x128xf32>
    tpu.vector_store %arg4[%c0_21, %c0_22], %29 {strides = array<i32>} : memref<8x128xf32, #tpu.memory_space<vmem>>, vector<8x128xf32>,
    return
  }
  func.func @transform_0(%arg0: i32) -> (i32, i32, i32) {
    %c0_i32 = arith.constant 0 : i32
    %c0_i32_0 = arith.constant 0 : i32
    %c0_i32_1 = arith.constant 0 : i32
    return %arg0, %c0_i32, %c0_i32_0 : i32, i32, i32
  }
  func.func @transform_1(%arg0: i32) -> (i32, i32) {
    %c0_i32 = arith.constant 0 : i32
    %c0_i32_0 = arith.constant 0 : i32
    %c0_i32_1 = arith.constant 0 : i32
    return %c0_i32, %c0_i32_0 : i32, i32
  }
  func.func @transform_2(%arg0: i32) -> (i32, i32) {
    %c0_i32 = arith.constant 0 : i32
    %c0_i32_0 = arith.constant 0 : i32
    %c0_i32_1 = arith.constant 0 : i32
    return %c0_i32, %c0_i32_0 : i32, i32
  }
  func.func @transform_3(%arg0: i32) -> (i32, i32) {
    %c0_i32 = arith.constant 0 : i32
    %c0_i32_0 = arith.constant 0 : i32
    return %arg0, %c0_i32 : i32, i32
  }
}

</mosaic_0001>

<llo_original>
// kernel: tpu_custom_call.1
$region0: #{tpu_custom_call.1}
  #allocation0 [shape = 'u32[]', space=smem, size = 0x4, offset = 0x4, fixed_abs, tag = 'smem constant byte address 0x4 - core index']
  #allocation1 [shape = 'u32[144,128]{1,0:T(1,128)}', space=vmem, size = 0x12000, scoped, tag = 'internal scratch']
  %s0 = inlined_call_operand.hbm [shape: f32[8,8,400], index: 0, kind: input, shape index: {}]
  %s1 = inlined_call_operand.hbm [shape: f32[400,128], index: 1, kind: input, shape index: {}]
  %s2 = inlined_call_operand.vmem [shape: f32[1,128], index: 2, kind: input, shape index: {}]
  %s3 = inlined_call_operand.hbm [shape: f32[8,128], index: 3, kind: output, shape index: {}]
  %s4 = sld [smem:[#allocation0]]
  $region30: #{tpu_custom_call.1} parent=0
    _
  %s6 = ssub.s32 1, %s4
  %s7 = scalar_select 0, %s6, %s4
  $region1: #{tpu_custom_call.1} parent=0
    #allocation2 [shape = 'u8[131072]{0}', space=vmem, size = 0x20000, scoped, tag = 'input window, operand 0, single buffered']
    #allocation3 [shape = 's32[1]{0}', space=sflag, size = 0x4, scoped, tag = 'scoped memory for tpu_custom_call.1']
    #allocation4 [shape = 's32[1]{0}', space=sflag, size = 0x4, scoped, tag = 'scoped memory for tpu_custom_call.1']
    #allocation5 [shape = 'u8[204800]{0}', space=vmem, size = 0x32000, scoped, tag = 'input window, operand 1, single buffered']
    #allocation6 [shape = 's32[1]{0}', space=sflag, size = 0x4, scoped, tag = 'scoped memory for tpu_custom_call.1']
    #allocation7 [shape = 'u8[4096]{0}', space=vmem, size = 0x1000, scoped, tag = 'output window, operand 0, single buffered']
    %8 = vsyncpa [#allocation3], 0
    %9 = vsyncpa [#allocation6], 0
    %10 = vsyncpa [#allocation4], 0
    // Predicated region
    $region2: #{tpu_custom_call.1} parent=1 // pred_check
      _
    $region3: #{tpu_custom_call.1} parent=1 // pred_check_branch
      %12 = sbr.rel (0) target = $region5
    $region4: #{tpu_custom_call.1} parent=1 // pred_region
      %s14 = ssub.s32 4096, 4096
      %15 = vsyncadd [#allocation3], %s14
      %s16 = sshll.u32 [#allocation2], 4
      %s17 = int_to_ptr.vmem [resolvable:$true] %s16
      %22 = dma.hbm_to_vmem [thread:$0]  %s0, 4096, %s17, [#allocation3], 512, 512, 32
    $region5: #{tpu_custom_call.1} parent=1 // pred_fallthru
      _
    // Predicated region
    $region6: #{tpu_custom_call.1} parent=1 // pred_check
      _
    $region7: #{tpu_custom_call.1} parent=1 // pred_check_branch
      %24 = sbr.rel (0) target = $region9
    $region8: #{tpu_custom_call.1} parent=1 // pred_region
      %s26 = ssub.s32 6400, 6400
      %27 = vsyncadd [#allocation6], %s26
      %s28 = sshll.u32 [#allocation5], 4
      %s29 = int_to_ptr.vmem [resolvable:$true] %s28
      %34 = dma.hbm_to_vmem [thread:$0]  %s1, 6400, %s29, [#allocation6], 128, 128, 8
    $region9: #{tpu_custom_call.1} parent=1 // pred_fallthru
      _
    // Predicated region
    $region10: #{tpu_custom_call.1} parent=1 // pred_check
      _
    $region11: #{tpu_custom_call.1} parent=1 // pred_check_branch
      %36 = sbr.rel (0) target = $region13
    $region12: #{tpu_custom_call.1} parent=1 // pred_region
      _
    $region13: #{tpu_custom_call.1} parent=1 // pred_fallthru
      _
    // Predicated region
    $region14: #{tpu_custom_call.1} parent=1 // pred_check
      _
    $region15: #{tpu_custom_call.1} parent=1 // pred_check_branch
      %38 = sbr.rel (0) target = $region17
    $region16: #{tpu_custom_call.1} parent=1 // pred_region
      %39 = dma.done [#allocation3], 4096
    $region17: #{tpu_custom_call.1} parent=1 // pred_fallthru
      _
    // Predicated region
    $region18: #{tpu_custom_call.1} parent=1 // pred_check
      _
    $region19: #{tpu_custom_call.1} parent=1 // pred_check_branch
      %41 = sbr.rel (0) target = $region21
    $region20: #{tpu_custom_call.1} parent=1 // pred_region
      %42 = dma.done [#allocation6], 6400
    $region21: #{tpu_custom_call.1} parent=1 // pred_fallthru
      _
    %v43 = vld [vmem:[#allocation2] ss:$8 sm:$0xf]
    %s44 = scalar_lea.vmem [#allocation2], 32
    %v45 = vld [vmem:[%s44] ss:$8 sm:$0xf]
    %s46 = scalar_lea.vmem [#allocation2], 64
    %v47 = vld [vmem:[%s46] ss:$8 sm:$0xf]
    %s48 = scalar_lea.vmem [#allocation2], 96
    %v49 = vld [vmem:[%s48] ss:$8 sm:$0xf]
    %s50 = scalar_lea.vmem [#allocation2], 128
    %v51 = vld [vmem:[%s50] ss:$8 sm:$0xf]
    %s52 = scalar_lea.vmem [#allocation2], 160
    %v53 = vld [vmem:[%s52] ss:$8 sm:$0xf]
    %s54 = scalar_lea.vmem [#allocation2], 192
    %v55 = vld [vmem:[%s54] ss:$8 sm:$0xf]
    %s56 = scalar_lea.vmem [#allocation2], 224
    %v57 = vld [vmem:[%s56] ss:$8 sm:$0xf]
    %s58 = scalar_lea.vmem [#allocation2], 1
    %v59 = vld [vmem:[%s58] ss:$8 sm:$0xf]
    %s60 = scalar_lea.vmem [#allocation2], 33
    %v61 = vld [vmem:[%s60] ss:$8 sm:$0xf]
    %s62 = scalar_lea.vmem [#allocation2], 65
    %v63 = vld [vmem:[%s62] ss:$8 sm:$0xf]
    %s64 = scalar_lea.vmem [#allocation2], 97
    %v65 = vld [vmem:[%s64] ss:$8 sm:$0xf]
    %s66 = scalar_lea.vmem [#allocation2], 129
    %v67 = vld [vmem:[%s66] ss:$8 sm:$0xf]
    %s68 = scalar_lea.vmem [#allocation2], 161
    %v69 = vld [vmem:[%s68] ss:$8 sm:$0xf]
    %s70 = scalar_lea.vmem [#allocation2], 193
    %v71 = vld [vmem:[%s70] ss:$8 sm:$0xf]
    %s72 = scalar_lea.vmem [#allocation2], 225
    %v73 = vld [vmem:[%s72] ss:$8 sm:$0xf]
    %v74 = vadd.f32 %v43, %v59
    %v75 = vadd.f32 %v45, %v61
    %v76 = vadd.f32 %v47, %v63
    %v77 = vadd.f32 %v49, %v65
    %v78 = vadd.f32 %v51, %v67
    %v79 = vadd.f32 %v53, %v69
    %v80 = vadd.f32 %v55, %v71
    %v81 = vadd.f32 %v57, %v73
    %s82 = scalar_lea.vmem [#allocation2], 2
    %v83 = vld [vmem:[%s82] ss:$8 sm:$0xf]
    %s84 = scalar_lea.vmem [#allocation2], 34
    %v85 = vld [vmem:[%s84] ss:$8 sm:$0xf]
    %s86 = scalar_lea.vmem [#allocation2], 66
    %v87 = vld [vmem:[%s86] ss:$8 sm:$0xf]
    %s88 = scalar_lea.vmem [#allocation2], 98
    %v89 = vld [vmem:[%s88] ss:$8 sm:$0xf]
    %s90 = scalar_lea.vmem [#allocation2], 130
    %v91 = vld [vmem:[%s90] ss:$8 sm:$0xf]
    %s92 = scalar_lea.vmem [#allocation2], 162
    %v93 = vld [vmem:[%s92] ss:$8 sm:$0xf]
    %s94 = scalar_lea.vmem [#allocation2], 194
    %v95 = vld [vmem:[%s94] ss:$8 sm:$0xf]
    %s96 = scalar_lea.vmem [#allocation2], 226
    %v97 = vld [vmem:[%s96] ss:$8 sm:$0xf]
    %v98 = vadd.f32 %v74, %v83
    %v99 = vadd.f32 %v75, %v85
    %v100 = vadd.f32 %v76, %v87
    %v101 = vadd.f32 %v77, %v89
    %v102 = vadd.f32 %v78, %v91
    %v103 = vadd.f32 %v79, %v93
    %v104 = vadd.f32 %v80, %v95
    %v105 = vadd.f32 %v81, %v97
    %s106 = scalar_lea.vmem [#allocation2], 3
    %v107 = vld [vmem:[%s106] ss:$8 sm:$0xf]
    %s108 = scalar_lea.vmem [#allocation2], 35
    %v109 = vld [vmem:[%s108] ss:$8 sm:$0xf]
    %s110 = scalar_lea.vmem [#allocation2], 67
    %v111 = vld [vmem:[%s110] ss:$8 sm:$0xf]
    %s112 = scalar_lea.vmem [#allocation2], 99
    %v113 = vld [vmem:[%s112] ss:$8 sm:$0xf]
    %s114 = scalar_lea.vmem [#allocation2], 131
    %v115 = vld [vmem:[%s114] ss:$8 sm:$0xf]
    %s116 = scalar_lea.vmem [#allocation2], 163
    %v117 = vld [vmem:[%s116] ss:$8 sm:$0xf]
    %s118 = scalar_lea.vmem [#allocation2], 195
    %v119 = vld [vmem:[%s118] ss:$8 sm:$0xf]
    %s120 = scalar_lea.vmem [#allocation2], 227
    %v121 = vld [vmem:[%s120] ss:$8 sm:$0xf]
    %v122 = vadd.f32 %v98, %v107
    %v123 = vadd.f32 %v99, %v109
    %v124 = vadd.f32 %v100, %v111
    %v125 = vadd.f32 %v101, %v113
    %v126 = vadd.f32 %v102, %v115
    %v127 = vadd.f32 %v103, %v117
    %v128 = vadd.f32 %v104, %v119
    %v129 = vadd.f32 %v105, %v121
    %s130 = scalar_lea.vmem [#allocation2], 4
    %v131 = vld [vmem:[%s130] ss:$8 sm:$0xf]
    %s132 = scalar_lea.vmem [#allocation2], 36
    %v133 = vld [vmem:[%s132] ss:$8 sm:$0xf]
    %s134 = scalar_lea.vmem [#allocation2], 68
    %v135 = vld [vmem:[%s134] ss:$8 sm:$0xf]
    %s136 = scalar_lea.vmem [#allocation2], 100
    %v137 = vld [vmem:[%s136] ss:$8 sm:$0xf]
    %s138 = scalar_lea.vmem [#allocation2], 132
    %v139 = vld [vmem:[%s138] ss:$8 sm:$0xf]
    %s140 = scalar_lea.vmem [#allocation2], 164
    %v141 = vld [vmem:[%s140] ss:$8 sm:$0xf]
    %s142 = scalar_lea.vmem [#allocation2], 196
    %v143 = vld [vmem:[%s142] ss:$8 sm:$0xf]
    %s144 = scalar_lea.vmem [#allocation2], 228
    %v145 = vld [vmem:[%s144] ss:$8 sm:$0xf]
    %v146 = vadd.f32 %v122, %v131
    %v147 = vadd.f32 %v123, %v133
    %v148 = vadd.f32 %v124, %v135
    %v149 = vadd.f32 %v125, %v137
    %v150 = vadd.f32 %v126, %v139
    %v151 = vadd.f32 %v127, %v141
    %v152 = vadd.f32 %v128, %v143
    %v153 = vadd.f32 %v129, %v145
    %s154 = scalar_lea.vmem [#allocation2], 5
    %v155 = vld [vmem:[%s154] ss:$8 sm:$0xf]
    %s156 = scalar_lea.vmem [#allocation2], 37
    %v157 = vld [vmem:[%s156] ss:$8 sm:$0xf]
    %s158 = scalar_lea.vmem [#allocation2], 69
    %v159 = vld [vmem:[%s158] ss:$8 sm:$0xf]
    %s160 = scalar_lea.vmem [#allocation2], 101
    %v161 = vld [vmem:[%s160] ss:$8 sm:$0xf]
    %s162 = scalar_lea.vmem [#allocation2], 133
    %v163 = vld [vmem:[%s162] ss:$8 sm:$0xf]
    %s164 = scalar_lea.vmem [#allocation2], 165
    %v165 = vld [vmem:[%s164] ss:$8 sm:$0xf]
    %s166 = scalar_lea.vmem [#allocation2], 197
    %v167 = vld [vmem:[%s166] ss:$8 sm:$0xf]
    %s168 = scalar_lea.vmem [#allocation2], 229
    %v169 = vld [vmem:[%s168] ss:$8 sm:$0xf]
    %v170 = vadd.f32 %v146, %v155
    %v171 = vadd.f32 %v147, %v157
    %v172 = vadd.f32 %v148, %v159
    %v173 = vadd.f32 %v149, %v161
    %v174 = vadd.f32 %v150, %v163
    %v175 = vadd.f32 %v151, %v165
    %v176 = vadd.f32 %v152, %v167
    %v177 = vadd.f32 %v153, %v169
    %s178 = scalar_lea.vmem [#allocation2], 6
    %v179 = vld [vmem:[%s178] ss:$8 sm:$0xf]
    %s180 = scalar_lea.vmem [#allocation2], 38
    %v181 = vld [vmem:[%s180] ss:$8 sm:$0xf]
    %s182 = scalar_lea.vmem [#allocation2], 70
    %v183 = vld [vmem:[%s182] ss:$8 sm:$0xf]
    %s184 = scalar_lea.vmem [#allocation2], 102
    %v185 = vld [vmem:[%s184] ss:$8 sm:$0xf]
    %s186 = scalar_lea.vmem [#allocation2], 134
    %v187 = vld [vmem:[%s186] ss:$8 sm:$0xf]
    %s188 = scalar_lea.vmem [#allocation2], 166
    %v189 = vld [vmem:[%s188] ss:$8 sm:$0xf]
    %s190 = scalar_lea.vmem [#allocation2], 198
    %v191 = vld [vmem:[%s190] ss:$8 sm:$0xf]
    %s192 = scalar_lea.vmem [#allocation2], 230
    %v193 = vld [vmem:[%s192] ss:$8 sm:$0xf]
    %v194 = vadd.f32 %v170, %v179
    %v195 = vadd.f32 %v171, %v181
    %v196 = vadd.f32 %v172, %v183
    %v197 = vadd.f32 %v173, %v185
    %v198 = vadd.f32 %v174, %v187
    %v199 = vadd.f32 %v175, %v189
    %v200 = vadd.f32 %v176, %v191
    %v201 = vadd.f32 %v177, %v193
    %s202 = scalar_lea.vmem [#allocation2], 7
    %v203 = vld [vmem:[%s202] ss:$8 sm:$0xf]
    %s204 = scalar_lea.vmem [#allocation2], 39
    %v205 = vld [vmem:[%s204] ss:$8 sm:$0xf]
    %s206 = scalar_lea.vmem [#allocation2], 71
    %v207 = vld [vmem:[%s206] ss:$8 sm:$0xf]
    %s208 = scalar_lea.vmem [#allocation2], 103
    %v209 = vld [vmem:[%s208] ss:$8 sm:$0xf]
    %s210 = scalar_lea.vmem [#allocation2], 135
    %v211 = vld [vmem:[%s210] ss:$8 sm:$0xf]
    %s212 = scalar_lea.vmem [#allocation2], 167
    %v213 = vld [vmem:[%s212] ss:$8 sm:$0xf]
    %s214 = scalar_lea.vmem [#allocation2], 199
    %v215 = vld [vmem:[%s214] ss:$8 sm:$0xf]
    %s216 = scalar_lea.vmem [#allocation2], 231
    %v217 = vld [vmem:[%s216] ss:$8 sm:$0xf]
    %v218 = vadd.f32 %v194, %v203
    %v219 = vadd.f32 %v195, %v205
    %v220 = vadd.f32 %v196, %v207
    %v221 = vadd.f32 %v197, %v209
    %v222 = vadd.f32 %v198, %v211
    %v223 = vadd.f32 %v199, %v213
    %v224 = vadd.f32 %v200, %v215
    %v225 = vadd.f32 %v201, %v217
    %v226 = vmax.f32 %v218, 0.0
    %v227 = vmax.f32 %v219, 0.0
    %v228 = vmax.f32 %v220, 0.0
    %v229 = vmax.f32 %v221, 0.0
    %v230 = vmax.f32 %v222, 0.0
    %v231 = vmax.f32 %v223, 0.0
    %v232 = vmax.f32 %v224, 0.0
    %v233 = vmax.f32 %v225, 0.0
    %v234 = vld [vmem:[#allocation5] sm:$0xff]
    %v235 = vld [vmem:[#allocation5 + $0x8] sm:$0xff]
    %v236 = vld [vmem:[#allocation5 + $0x10] sm:$0xff]
    %v237 = vld [vmem:[#allocation5 + $0x18] sm:$0xff]
    %v238 = vld [vmem:[#allocation5 + $0x20] sm:$0xff]
    %v239 = vld [vmem:[#allocation5 + $0x28] sm:$0xff]
    %v240 = vld [vmem:[#allocation5 + $0x30] sm:$0xff]
    %v241 = vld [vmem:[#allocation5 + $0x38] sm:$0xff]
    %v242 = vld [vmem:[#allocation5 + $0x40] sm:$0xff]
    %v243 = vld [vmem:[#allocation5 + $0x48] sm:$0xff]
    %v244 = vld [vmem:[#allocation5 + $0x50] sm:$0xff]
    %v245 = vld [vmem:[#allocation5 + $0x58] sm:$0xff]
    %v246 = vld [vmem:[#allocation5 + $0x60] sm:$0xff]
    %v247 = vld [vmem:[#allocation5 + $0x68] sm:$0xff]
    %v248 = vld [vmem:[#allocation5 + $0x70] sm:$0xff]
    %v249 = vld [vmem:[#allocation5 + $0x78] sm:$0xff]
    %v250 = vld [vmem:[#allocation5 + $0x80] sm:$0xff]
    %v251 = vld [vmem:[#allocation5 + $0x88] sm:$0xff]
    %v252 = vld [vmem:[#allocation5 + $0x90] sm:$0xff]
    %v253 = vld [vmem:[#allocation5 + $0x98] sm:$0xff]
    %v254 = vld [vmem:[#allocation5 + $0xa0] sm:$0xff]
    %v255 = vld [vmem:[#allocation5 + $0xa8] sm:$0xff]
    %v256 = vld [vmem:[#allocation5 + $0xb0] sm:$0xff]
    %v257 = vld [vmem:[#allocation5 + $0xb8] sm:$0xff]
    %v258 = vld [vmem:[#allocation5 + $0xc0] sm:$0xff]
    %v259 = vld [vmem:[#allocation5 + $0xc8] sm:$0xff]
    %v260 = vld [vmem:[#allocation5 + $0xd0] sm:$0xff]
    %v261 = vld [vmem:[#allocation5 + $0xd8] sm:$0xff]
    %v262 = vld [vmem:[#allocation5 + $0xe0] sm:$0xff]
    %v263 = vld [vmem:[#allocation5 + $0xe8] sm:$0xff]
    %v264 = vld [vmem:[#allocation5 + $0xf0] sm:$0xff]
    %v265 = vld [vmem:[#allocation5 + $0xf8] sm:$0xff]
    %v266 = vld [vmem:[#allocation5 + $0x100] sm:$0xff]
    %v267 = vld [vmem:[#allocation5 + $0x108] sm:$0xff]
    %v268 = vld [vmem:[#allocation5 + $0x110] sm:$0xff]
    %v269 = vld [vmem:[#allocation5 + $0x118] sm:$0xff]
    %v270 = vld [vmem:[#allocation5 + $0x120] sm:$0xff]
    %v271 = vld [vmem:[#allocation5 + $0x128] sm:$0xff]
    %v272 = vld [vmem:[#allocation5 + $0x130] sm:$0xff]
    %v273 = vld [vmem:[#allocation5 + $0x138] sm:$0xff]
    %v274 = vld [vmem:[#allocation5 + $0x140] sm:$0xff]
    %v275 = vld [vmem:[#allocation5 + $0x148] sm:$0xff]
    %v276 = vld [vmem:[#allocation5 + $0x150] sm:$0xff]
    %v277 = vld [vmem:[#allocation5 + $0x158] sm:$0xff]
    %v278 = vld [vmem:[#allocation5 + $0x160] sm:$0xff]
    %v279 = vld [vmem:[#allocation5 + $0x168] sm:$0xff]
    %v280 = vld [vmem:[#allocation5 + $0x170] sm:$0xff]
    %v281 = vld [vmem:[#allocation5 + $0x178] sm:$0xff]
    %v282 = vld [vmem:[#allocation5 + $0x180] sm:$0xff]
    %v283 = vld [vmem:[#allocation5 + $0x188] sm:$0xff]
    %v284 = vld [vmem:[%s2] sm:$0x1]
    %v286 = vlaneseq
    %v287 = vshrl.u32 %v286, 7
    %v288 = vsub.s32 0, %v287
    %v289 = vrot.slane %v284, %v288
    %v299 = vcombine.low %v226, %v227
    %v300 = vcombine.low %v228, %v229
    %v301 = vcombine.low %v230, %v231
    %v302 = vcombine.low %v232, %v233
    %v304 = vunpack.c.l.s4 1966171168
    %v305 = vunpack.c.0.s8 %v304
    %v306 = vlaneseq
    %v307 = vshrl.u32 %v306, 7
    %v308 = vsub.s32 %v305, %v307
    %v309 = vrot.slane %v299, %v308
    %v311 = vunpack.c.l.s4 1966171168
    %v312 = vunpack.c.0.s8 %v311
    %v313 = vlaneseq
    %v314 = vshrl.u32 %v313, 7
    %v315 = vsub.s32 %v312, %v314
    %v316 = vrot.slane %v300, %v315
    %v318 = vunpack.c.l.s4 1966171168
    %v319 = vunpack.c.0.s8 %v318
    %v320 = vlaneseq
    %v321 = vshrl.u32 %v320, 7
    %v322 = vsub.s32 %v319, %v321
    %v323 = vrot.slane %v301, %v322
    %v325 = vunpack.c.l.s4 1966171168
    %v326 = vunpack.c.0.s8 %v325
    %v327 = vlaneseq
    %v328 = vshrl.u32 %v327, 7
    %v329 = vsub.s32 %v326, %v328
    %v330 = vrot.slane %v302, %v329
    %v331 = vcombine.low %v309, %v316
    %v332 = vcombine.high %v309, %v316
    %v333 = vcombine.low %v323, %v330
    %v334 = vcombine.high %v323, %v330
    %v336 = vunpack.c.l.s4 1966171168
    %v337 = vunpack.c.0.s8 %v336
    %v338 = vlaneseq
    %v339 = vshrl.u32 %v338, 7
    %v340 = vsub.s32 %v337, %v339
    %v341 = vrot.slane %v331, %v340
    %v343 = vunpack.c.l.s4 1966171168
    %v344 = vunpack.c.0.s8 %v343
    %v345 = vlaneseq
    %v346 = vshrl.u32 %v345, 7
    %v347 = vsub.s32 %v344, %v346
    %v348 = vrot.slane %v332, %v347
    %v350 = vunpack.c.l.s4 1966171168
    %v351 = vunpack.c.0.s8 %v350
    %v352 = vlaneseq
    %v353 = vshrl.u32 %v352, 7
    %v354 = vsub.s32 %v351, %v353
    %v355 = vrot.slane %v333, %v354
    %v357 = vunpack.c.l.s4 1966171168
    %v358 = vunpack.c.0.s8 %v357
    %v359 = vlaneseq
    %v360 = vshrl.u32 %v359, 7
    %v361 = vsub.s32 %v358, %v360
    %v362 = vrot.slane %v334, %v361
    %v363 = vcombine.low %v341, %v355
    %v364 = vcombine.high %v341, %v355
    %v365 = vcombine.low %v348, %v362
    %v366 = vcombine.high %v348, %v362
    %vm370 = vcmask 130048
    %v371 = vsel %vm370, %v366, 0
    %373 = vmatprep.subr.mxu0 0.0
    %374 = vmatpush1.msra.mxu0 %v234
    %375 = vmatprep.subr.mxu0 0.0
    %376 = vmatpush1.msra.mxu0 %v235
    %377 = vmatprep.subr.mxu0 0.0
    %378 = vmatpush1.msra.mxu0 %v236
    %379 = vmatprep.subr.mxu0 0.0
    %380 = vmatpush1.msra.mxu0 %v237
    %381 = vmatprep.subr.mxu0 0.0
    %382 = vmatpush1.msra.mxu0 %v238
    %383 = vmatprep.subr.mxu0 0.0
    %384 = vmatpush1.msra.mxu0 %v239
    %385 = vmatprep.subr.mxu0 0.0
    %386 = vmatpush1.msra.mxu0 %v240
    %387 = vmatprep.subr.mxu0 0.0
    %388 = vmatpush1.msra.mxu0 %v241
    %389 = vmatprep.subr.mxu0 0.0
    %390 = vmatpush1.msra.mxu0 %v242
    %391 = vmatprep.subr.mxu0 0.0
    %392 = vmatpush1.msra.mxu0 %v243
    %393 = vmatprep.subr.mxu0 0.0
    %394 = vmatpush1.msra.mxu0 %v244
    %395 = vmatprep.subr.mxu0 0.0
    %396 = vmatpush1.msra.mxu0 %v245
    %397 = vmatprep.subr.mxu0 0.0
    %398 = vmatpush1.msra.mxu0 %v246
    %399 = vmatprep.subr.mxu0 0.0
    %400 = vmatpush1.msra.mxu0 %v247
    %401 = vmatprep.subr.mxu0 0.0
    %402 = vmatpush1.msra.mxu0 %v248
    %403 = vmatprep.subr.mxu0 0.0
    %404 = vmatpush1.msra.mxu0 %v249
    %405 = vmatprep.subr.mxu0 0.0
    %406 = vmatpush1.msra.mxu0 %v250
    %407 = vmatprep.subr.mxu0 0.0
    %408 = vmatpush1.msra.mxu0 %v251
    %409 = vmatprep.subr.mxu0 0.0
    %410 = vmatpush1.msra.mxu0 %v252
    %411 = vmatprep.subr.mxu0 0.0
    %412 = vmatpush1.msra.mxu0 %v253
    %413 = vmatprep.subr.mxu0 0.0
    %414 = vmatpush1.msra.mxu0 %v254
    %415 = vmatprep.subr.mxu0 0.0
    %416 = vmatpush1.msra.mxu0 %v255
    %417 = vmatprep.subr.mxu0 0.0
    %418 = vmatpush1.msra.mxu0 %v256
    %419 = vmatprep.subr.mxu0 0.0
    %420 = vmatpush1.msra.mxu0 %v257
    %421 = vmatprep.subr.mxu0 0.0
    %422 = vmatpush1.msra.mxu0 %v258
    %423 = vmatprep.subr.mxu0 0.0
    %424 = vmatpush1.msra.mxu0 %v259
    %425 = vmatprep.subr.mxu0 0.0
    %426 = vmatpush1.msra.mxu0 %v260
    %427 = vmatprep.subr.mxu0 0.0
    %428 = vmatpush1.msra.mxu0 %v261
    %429 = vmatprep.subr.mxu0 0.0
    %430 = vmatpush1.msra.mxu0 %v262
    %431 = vmatprep.subr.mxu0 0.0
    %432 = vmatpush1.msra.mxu0 %v263
    %433 = vmatprep.subr.mxu0 0.0
    %434 = vmatpush1.msra.mxu0 %v264
    %435 = vmatprep.subr.mxu0 0.0
    %436 = vmatpush1.msra.mxu0 %v265
    %437 = vmatprep.mubr.f32.mxu0 %v365
    %438 = vmatmul.mubr.f32.gmra.mrb[0].mxu0 %v363
    %v439 = vpop.f32.mrb[0].mxu0
    %v440 = vadd.f32 %v289, %v439
    %v441 = vpop.f32.mrb[0].mxu0
    %442 = vdwg.mxu0
    %443 = vmatprep.subr.mxu0 0.0
    %444 = vmatpush1.msra.mxu0 %v266
    %445 = vmatprep.subr.mxu0 0.0
    %446 = vmatpush1.msra.mxu0 %v267
    %447 = vmatprep.subr.mxu0 0.0
    %448 = vmatpush1.msra.mxu0 %v268
    %449 = vmatprep.subr.mxu0 0.0
    %450 = vmatpush1.msra.mxu0 %v269
    %451 = vmatprep.subr.mxu0 0.0
    %452 = vmatpush1.msra.mxu0 %v270
    %453 = vmatprep.subr.mxu0 0.0
    %454 = vmatpush1.msra.mxu0 %v271
    %455 = vmatprep.subr.mxu0 0.0
    %456 = vmatpush1.msra.mxu0 %v272
    %457 = vmatprep.subr.mxu0 0.0
    %458 = vmatpush1.msra.mxu0 %v273
    %459 = vmatprep.subr.mxu0 0.0
    %460 = vmatpush1.msra.mxu0 %v274
    %461 = vmatprep.subr.mxu0 0.0
    %462 = vmatpush1.msra.mxu0 %v275
    %463 = vmatprep.subr.mxu0 0.0
    %464 = vmatpush1.msra.mxu0 %v276
    %465 = vmatprep.subr.mxu0 0.0
    %466 = vmatpush1.msra.mxu0 %v277
    %467 = vmatprep.subr.mxu0 0.0
    %468 = vmatpush1.msra.mxu0 %v278
    %469 = vmatprep.subr.mxu0 0.0
    %470 = vmatpush1.msra.mxu0 %v279
    %471 = vmatprep.subr.mxu0 0.0
    %472 = vmatpush1.msra.mxu0 %v280
    %473 = vmatprep.subr.mxu0 0.0
    %474 = vmatpush1.msra.mxu0 %v281
    %475 = vmatprep.subr.mxu0 0.0
    %476 = vmatpush1.msra.mxu0 %v282
    %477 = vmatprep.subr.mxu0 0.0
    %478 = vmatpush1.msra.mxu0 %v283
    %479 = vmatprep.subr.mxu0 0.0
    %480 = vmatpush1.msra.mxu0 0.0
    %481 = vmatprep.subr.mxu0 0.0
    %482 = vmatpush1.msra.mxu0 0.0
    %483 = vmatprep.subr.mxu0 0.0
    %484 = vmatpush1.msra.mxu0 0.0
    %485 = vmatprep.subr.mxu0 0.0
    %486 = vmatpush1.msra.mxu0 0.0
    %487 = vmatprep.subr.mxu0 0.0
    %488 = vmatpush1.msra.mxu0 0.0
    %489 = vmatprep.subr.mxu0 0.0
    %490 = vmatpush1.msra.mxu0 0.0
    %491 = vmatprep.subr.mxu0 0.0
    %492 = vmatpush1.msra.mxu0 0.0
    %493 = vmatprep.subr.mxu0 0.0
    %494 = vmatpush1.msra.mxu0 0.0
    %495 = vmatprep.subr.mxu0 0.0
    %496 = vmatpush1.msra.mxu0 0.0
    %497 = vmatprep.subr.mxu0 0.0
    %498 = vmatpush1.msra.mxu0 0.0
    %499 = vmatprep.subr.mxu0 0.0
    %500 = vmatpush1.msra.mxu0 0.0
    %501 = vmatprep.subr.mxu0 0.0
    %502 = vmatpush1.msra.mxu0 0.0
    %503 = vmatprep.subr.mxu0 0.0
    %504 = vmatpush1.msra.mxu0 0.0
    %505 = vmatprep.subr.mxu0 0.0
    %506 = vmatpush1.msra.mxu0 0.0
    %507 = vmatprep.mubr.f32.mxu0 %v371
    %508 = vmatmul.mubr.f32.gmra.mrb[0].mxu0 %v364
    %v509 = vpop.f32.mrb[0].mxu0
    %v510 = vadd.f32 %v440, %v509
    %v511 = vpop.f32.mrb[0].mxu0
    %512 = vdwg.mxu0
    %513 = vst [vmem:[#allocation7] sm:$0xff] %v510
    // Predicated region
    $region22: #{tpu_custom_call.1} parent=1 // pred_check
      _
    $region23: #{tpu_custom_call.1} parent=1 // pred_check_branch
      %515 = sbr.rel (0) target = $region25
    $region24: #{tpu_custom_call.1} parent=1 // pred_region
      %s517 = ssub.s32 128, 128
      %518 = vsyncadd [#allocation4], %s517
      %s520 = sshll.u32 [#allocation7], 4
      %s521 = int_to_ptr.vmem [resolvable:$true] %s520
      %523 = dma.vmem_to_hbm [thread:$0]  %s521, 128, %s3, [#allocation4]
    $region25: #{tpu_custom_call.1} parent=1 // pred_fallthru
      _
    // Predicated region
    $region26: #{tpu_custom_call.1} parent=1 // pred_check
      _
    $region27: #{tpu_custom_call.1} parent=1 // pred_check_branch
      %525 = sbr.rel (0) target = $region29
    $region28: #{tpu_custom_call.1} parent=1 // pred_region
      %526 = dma.done [#allocation4], 128
    $region29: #{tpu_custom_call.1} parent=1 // pred_fallthru
      _
    %527 = vsyncpa [#allocation3], 1
    %528 = vsyncpa [#allocation6], 1
    %529 = vsyncpa [#allocation4], 1

</llo_original>
